<compile_context>
chip_gen: v7x
topology: tpu7x:2x2x1
jax: 0.10.0
libtpu: 0.0.40
codegen_flags: <defaults>
</compile_context>

<pallas_src>
import jax
import jax.numpy as jnp
from jax.experimental import pallas as pl
from jax.experimental.pallas import tpu as pltpu

LANES_PREFERRED = (512, 256, 128)   # lane-dense last-dim candidates (multiples of 128)
TILE_M_MAX = 1024                   # rows per tile: 1024 * 512 * 4 B = 2 MiB per stream


def scale_t_kernel(scale_ref, x_ref, code_ref, quant_ref, dequant_ref):
    # scale_ref: SMEM (1,) ; x_ref / outputs: VMEM (tile_m, lanes) blocks.
    s = scale_ref[0]
    x = x_ref[...]
    # Exact division (not x * (1/s)): matches torch's x / scale and is free here
    # (kernel is memory-bound, VPU/EUP slots are idle).
    code = x / s
    q = jnp.round(code)              # round-half-to-even == torch.round
    code_ref[...] = code
    quant_ref[...] = q               # STE: forward value of quant == round(code)
    dequant_ref[...] = q * s


def _pick_lanes(total):
    """Largest lane width that divides `total`; else flag that padding is needed."""
    for lanes in LANES_PREFERRED:
        if total % lanes == 0:
            return lanes, False
    return LANES_PREFERRED[0], True


def scale_t_forward(x, scale, *, tile_m_max=TILE_M_MAX):
    """x: any-shape float32 tensor (e.g. NCHW), scale: (1,) float32.

    Returns (code, quant, dequant), each with x's shape/dtype.
    """
    orig_shape = x.shape
    total = int(x.size)

    lanes, needs_pad = _pick_lanes(total)
    flat = x.reshape(-1)                      # free (metadata-only) for contiguous x
    if needs_pad:
        # Rare path (total not a multiple of 128): one pad copy in, one slice copy
        # per output.  TODO(synk): a flat 1-D BlockSpec (block multiple of 1024)
        # would remove even this copy.
        padded_total = -(-total // lanes) * lanes
        flat = jnp.pad(flat, (0, padded_total - total))
    else:
        padded_total = total

    rows = padded_total // lanes
    x2 = flat.reshape(rows, lanes)            # free reshape

    # Row tile: whole array if it fits (block == full dims is always legal),
    # otherwise a multiple-of-8 tile with a ragged (masked) last block.
    if rows <= tile_m_max:
        tile_m = rows
    else:
        tile_m = max(8, (tile_m_max // 8) * 8)
    grid = (pl.cdiv(rows, tile_m),)

    out_sd = jax.ShapeDtypeStruct((rows, lanes), x.dtype)

    def tile_spec():
        return pl.BlockSpec((tile_m, lanes), lambda i: (i, 0))

    def run(row_semantics):
        return pl.pallas_call(
            scale_t_kernel,
            out_shape=(out_sd, out_sd, out_sd),
            grid=grid,
            in_specs=[
                pl.BlockSpec(memory_space=pltpu.MemorySpace.SMEM),  # scalar scale
                tile_spec(),                                        # x tile
            ],
            out_specs=(tile_spec(), tile_spec(), tile_spec()),
            compiler_params=pltpu.CompilerParams(
                dimension_semantics=(row_semantics,),
                # 1 in + 3 out streams, double-buffered, 2 MiB tiles -> ~16 MiB.
                # 48 MiB cap keeps pipeline depth on v5e/v6e (16/32 MiB scoped
                # defaults) and stays under v7x's 64 MiB physical VMEM.
                vmem_limit_bytes=48 * 1024 * 1024,
            ),
        )(scale, x2)

    # Prefer CORE_PARALLEL so the row-tile axis genuinely shards across both
    # TensorCores on v7x; fall back to plain "parallel" where unsupported.
    outs = None
    core_parallel = getattr(pltpu, "CORE_PARALLEL", None)
    if core_parallel is not None:
        try:
            outs = run(core_parallel)
            jax.block_until_ready(outs)
        except Exception:
            outs = None
    if outs is None:
        outs = run("parallel")

    def back(a):
        if needs_pad:
            a = a.reshape(-1)[:total]
        return a.reshape(orig_shape)

    code, quant, dequant = outs
    return back(code), back(quant), back(dequant)


if __name__ == "__main__":
    key = jax.random.PRNGKey(0)
    # Small NCHW input consistent with the module's usage.
    x = jax.random.normal(key, (2, 4, 16, 16), dtype=jnp.float32) * 3.0
    scale = jnp.array([1.0], dtype=jnp.float32)   # nn.Parameter(torch.Tensor([1.0]))

    def ref(xv, sv):
        rc = xv / sv
        rq = jnp.round(rc)
        return rc, rq, rq * sv

    def check(out, xv, sv):
        rc, rq, rd = ref(xv, sv)
        c, q, d = out
        assert c.shape == xv.shape and q.shape == xv.shape and d.shape == xv.shape
        assert jnp.allclose(c, rc, rtol=1e-6, atol=1e-6)
        assert jnp.allclose(q, rq, rtol=1e-6, atol=1e-6)
        assert jnp.allclose(d, rd, rtol=1e-6, atol=1e-6)

    # 1) Default parameter (scale = 1.0), copy-free path (2048 elems = 4 x 512).
    out1 = scale_t_forward(x, scale)
    jax.block_until_ready(out1)
    check(out1, x, scale[0])

    # 2) Non-power-of-two scale exercises the exact-division path.
    scale2 = jnp.array([0.3], dtype=jnp.float32)
    out2 = scale_t_forward(x, scale2)
    jax.block_until_ready(out2)
    check(out2, x, scale2[0])

    # 3) Awkward element count (not a multiple of 128) -> minimal pad fallback.
    x3 = jax.random.normal(jax.random.PRNGKey(1), (2, 3, 5, 7), dtype=jnp.float32)
    out3 = scale_t_forward(x3, scale2)
    jax.block_until_ready(out3)
    check(out3, x3, scale2[0])

    # 4) Multi-tile ragged grid (last row block masked) via a small tile override.
    x4 = jax.random.normal(jax.random.PRNGKey(2), (2, 4, 16, 48), dtype=jnp.float32)
    out4 = scale_t_forward(x4, scale, tile_m_max=8)
    jax.block_until_ready(out4)
    check(out4, x4, scale[0])

    print("KERNEL_OK")
</pallas_src>

<mosaic_0001>
module attributes {stable_mosaic.version = 11 : i64} {
  func.func @scale_t_kernel(%arg0: i32, %arg1: memref<1xf32, #tpu.memory_space<smem>>, %arg2: memref<4x512xf32, #tpu.memory_space<vmem>>, %arg3: memref<4x512xf32, #tpu.memory_space<vmem>>, %arg4: memref<4x512xf32, #tpu.memory_space<vmem>>, %arg5: memref<4x512xf32, #tpu.memory_space<vmem>>) attributes {dimension_semantics = [#tpu.dimension_semantics<core_parallel>], iteration_bounds = array<i64: 1>, scalar_prefetch = 0 : i64, scratch_operands = 0 : i64, tpu.core_type = #tpu.core_type<tc>, window_params = [{transform_indices = @transform_0, window_bounds = array<i64: 1>}, {transform_indices = @transform_1, window_bounds = array<i64: 4, 512>}, {transform_indices = @transform_2, window_bounds = array<i64: 4, 512>}, {transform_indices = @transform_3, window_bounds = array<i64: 4, 512>}, {transform_indices = @transform_4, window_bounds = array<i64: 4, 512>}]} {
    %c0 = arith.constant 0 : index
    %0 = memref.load %arg1[%c0] : memref<1xf32, #tpu.memory_space<smem>>
    %c0_0 = arith.constant 0 : index
    %c0_1 = arith.constant 0 : index
    %1 = vector.load %arg2[%c0_0, %c0_1] : memref<4x512xf32, #tpu.memory_space<vmem>>, vector<4x512xf32>
    %2 = vector.broadcast %0 : f32 to vector<4x512xf32>
    %3 = arith.divf %1, %2 : vector<4x512xf32>
    %4 = math.roundeven %3 : vector<4x512xf32>
    %c0_2 = arith.constant 0 : index
    %c0_3 = arith.constant 0 : index
    %5 = vector.load %arg3[%c0_2, %c0_3] : memref<4x512xf32, #tpu.memory_space<vmem>>, vector<4x512xf32>
    tpu.vector_store %arg3[%c0_2, %c0_3], %3 {strides = array<i32>} : memref<4x512xf32, #tpu.memory_space<vmem>>, vector<4x512xf32>,
    %c0_4 = arith.constant 0 : index
    %c0_5 = arith.constant 0 : index
    %6 = vector.load %arg4[%c0_4, %c0_5] : memref<4x512xf32, #tpu.memory_space<vmem>>, vector<4x512xf32>
    tpu.vector_store %arg4[%c0_4, %c0_5], %4 {strides = array<i32>} : memref<4x512xf32, #tpu.memory_space<vmem>>, vector<4x512xf32>,
    %7 = vector.broadcast %0 : f32 to vector<4x512xf32>
    %8 = arith.mulf %4, %7 : vector<4x512xf32>
    %c0_6 = arith.constant 0 : index
    %c0_7 = arith.constant 0 : index
    %9 = vector.load %arg5[%c0_6, %c0_7] : memref<4x512xf32, #tpu.memory_space<vmem>>, vector<4x512xf32>
    tpu.vector_store %arg5[%c0_6, %c0_7], %8 {strides = array<i32>} : memref<4x512xf32, #tpu.memory_space<vmem>>, vector<4x512xf32>,
    return
  }
  func.func @transform_0(%arg0: i32) -> i32 {
    %c0_i32 = arith.constant 0 : i32
    %c0_i32_0 = arith.constant 0 : i32
    return %c0_i32 : i32
  }
  func.func @transform_1(%arg0: i32) -> (i32, i32) {
    %c0_i32 = arith.constant 0 : i32
    %c0_i32_0 = arith.constant 0 : i32
    return %arg0, %c0_i32 : i32, i32
  }
  func.func @transform_2(%arg0: i32) -> (i32, i32) {
    %c0_i32 = arith.constant 0 : i32
    %c0_i32_0 = arith.constant 0 : i32
    return %arg0, %c0_i32 : i32, i32
  }
  func.func @transform_3(%arg0: i32) -> (i32, i32) {
    %c0_i32 = arith.constant 0 : i32
    %c0_i32_0 = arith.constant 0 : i32
    return %arg0, %c0_i32 : i32, i32
  }
  func.func @transform_4(%arg0: i32) -> (i32, i32) {
    %c0_i32 = arith.constant 0 : i32
    %c0_i32_0 = arith.constant 0 : i32
    return %arg0, %c0_i32 : i32, i32
  }
}

module attributes {stable_mosaic.version = 11 : i64} {
  func.func @scale_t_kernel(%arg0: i32, %arg1: memref<1xf32, #tpu.memory_space<smem>>, %arg2: memref<4x512xf32, #tpu.memory_space<vmem>>, %arg3: memref<4x512xf32, #tpu.memory_space<vmem>>, %arg4: memref<4x512xf32, #tpu.memory_space<vmem>>, %arg5: memref<4x512xf32, #tpu.memory_space<vmem>>) attributes {dimension_semantics = [#tpu.dimension_semantics<parallel>], iteration_bounds = array<i64: 1>, scalar_prefetch = 0 : i64, scratch_operands = 0 : i64, tpu.core_type = #tpu.core_type<tc>, window_params = [{transform_indices = @transform_0, window_bounds = array<i64: 1>}, {transform_indices = @transform_1, window_bounds = array<i64: 4, 512>}, {transform_indices = @transform_2, window_bounds = array<i64: 4, 512>}, {transform_indices = @transform_3, window_bounds = array<i64: 4, 512>}, {transform_indices = @transform_4, window_bounds = array<i64: 4, 512>}]} {
    %c0 = arith.constant 0 : index
    %0 = memref.load %arg1[%c0] : memref<1xf32, #tpu.memory_space<smem>>
    %c0_0 = arith.constant 0 : index
    %c0_1 = arith.constant 0 : index
    %1 = vector.load %arg2[%c0_0, %c0_1] : memref<4x512xf32, #tpu.memory_space<vmem>>, vector<4x512xf32>
    %2 = vector.broadcast %0 : f32 to vector<4x512xf32>
    %3 = arith.divf %1, %2 : vector<4x512xf32>
    %4 = math.roundeven %3 : vector<4x512xf32>
    %c0_2 = arith.constant 0 : index
    %c0_3 = arith.constant 0 : index
    %5 = vector.load %arg3[%c0_2, %c0_3] : memref<4x512xf32, #tpu.memory_space<vmem>>, vector<4x512xf32>
    tpu.vector_store %arg3[%c0_2, %c0_3], %3 {strides = array<i32>} : memref<4x512xf32, #tpu.memory_space<vmem>>, vector<4x512xf32>,
    %c0_4 = arith.constant 0 : index
    %c0_5 = arith.constant 0 : index
    %6 = vector.load %arg4[%c0_4, %c0_5] : memref<4x512xf32, #tpu.memory_space<vmem>>, vector<4x512xf32>
    tpu.vector_store %arg4[%c0_4, %c0_5], %4 {strides = array<i32>} : memref<4x512xf32, #tpu.memory_space<vmem>>, vector<4x512xf32>,
    %7 = vector.broadcast %0 : f32 to vector<4x512xf32>
    %8 = arith.mulf %4, %7 : vector<4x512xf32>
    %c0_6 = arith.constant 0 : index
    %c0_7 = arith.constant 0 : index
    %9 = vector.load %arg5[%c0_6, %c0_7] : memref<4x512xf32, #tpu.memory_space<vmem>>, vector<4x512xf32>
    tpu.vector_store %arg5[%c0_6, %c0_7], %8 {strides = array<i32>} : memref<4x512xf32, #tpu.memory_space<vmem>>, vector<4x512xf32>,
    return
  }
  func.func @transform_0(%arg0: i32) -> i32 {
    %c0_i32 = arith.constant 0 : i32
    %c0_i32_0 = arith.constant 0 : i32
    return %c0_i32 : i32
  }
  func.func @transform_1(%arg0: i32) -> (i32, i32) {
    %c0_i32 = arith.constant 0 : i32
    %c0_i32_0 = arith.constant 0 : i32
    return %arg0, %c0_i32 : i32, i32
  }
  func.func @transform_2(%arg0: i32) -> (i32, i32) {
    %c0_i32 = arith.constant 0 : i32
    %c0_i32_0 = arith.constant 0 : i32
    return %arg0, %c0_i32 : i32, i32
  }
  func.func @transform_3(%arg0: i32) -> (i32, i32) {
    %c0_i32 = arith.constant 0 : i32
    %c0_i32_0 = arith.constant 0 : i32
    return %arg0, %c0_i32 : i32, i32
  }
  func.func @transform_4(%arg0: i32) -> (i32, i32) {
    %c0_i32 = arith.constant 0 : i32
    %c0_i32_0 = arith.constant 0 : i32
    return %arg0, %c0_i32 : i32, i32
  }
}

</mosaic_0001>

<llo_original>
// kernel: tpu_custom_call.1
$region0: #{tpu_custom_call.1}
  #allocation0 [shape = 'u32[]', space=smem, size = 0x4, offset = 0x4, fixed_abs, tag = 'smem constant byte address 0x4 - core index']
  #allocation1 [shape = 'u32[144,128]{1,0:T(1,128)}', space=vmem, size = 0x12000, scoped, tag = 'internal scratch']
  #allocation2 [shape = 'f32[1]{0:T(128)S(6)}', space=smem, size = 0x200, scoped, tag = 'scoped memory for tpu_custom_call.1']
  %s0 = inlined_call_operand.<no memory space> [shape: f32[1], index: 0, kind: input, shape index: {}]
  %s1 = inlined_call_operand.hbm [shape: f32[4,512], index: 1, kind: input, shape index: {}]
  %s2 = inlined_call_operand.hbm [shape: f32[4,512], index: 2, kind: output, shape index: {0}]
  %s3 = inlined_call_operand.hbm [shape: f32[4,512], index: 3, kind: output, shape index: {1}]
  %s4 = inlined_call_operand.hbm [shape: f32[4,512], index: 4, kind: output, shape index: {2}]
  %5 = xla_tuple %s2, %s3, %s4
  %s6 = sld [smem:[#allocation0]]
  $region38: #{tpu_custom_call.1} parent=0
    _
  %s8 = ssub.s32 1, %s6
  %s9 = scalar_select 0, %s8, %s6
  %10 = sst [smem:[#allocation2]] %s0
  $region1: #{tpu_custom_call.1} parent=0
    #allocation3 [shape = 'u8[8192]{0}', space=vmem, size = 0x2000, scoped, tag = 'input window, operand 1, single buffered']
    #allocation4 [shape = 's32[1]{0}', space=sflag, size = 0x4, scoped, tag = 'scoped memory for tpu_custom_call.1']
    #allocation5 [shape = 's32[1]{0}', space=sflag, size = 0x4, scoped, tag = 'scoped memory for tpu_custom_call.1']
    #allocation6 [shape = 'u8[8192]{0}', space=vmem, size = 0x2000, scoped, tag = 'output window, operand 0, single buffered']
    #allocation7 [shape = 'u8[8192]{0}', space=vmem, size = 0x2000, scoped, tag = 'output window, operand 1, single buffered']
    #allocation8 [shape = 's32[1]{0}', space=sflag, size = 0x4, scoped, tag = 'scoped memory for tpu_custom_call.1']
    #allocation9 [shape = 'u8[8192]{0}', space=vmem, size = 0x2000, scoped, tag = 'output window, operand 2, single buffered']
    %11 = vsyncpa [#allocation4], 0
    %12 = vsyncpa [#allocation5], 0
    %13 = vsyncpa [#allocation8], 0
    // Predicated region
    $region2: #{tpu_custom_call.1} parent=1 // pred_check
      _
    $region3: #{tpu_custom_call.1} parent=1 // pred_check_branch
      %15 = sbr.rel (0) target = $region5
    $region4: #{tpu_custom_call.1} parent=1 // pred_region
      _
    $region5: #{tpu_custom_call.1} parent=1 // pred_fallthru
      _
    // Predicated region
    $region6: #{tpu_custom_call.1} parent=1 // pred_check
      _
    $region7: #{tpu_custom_call.1} parent=1 // pred_check_branch
      %17 = sbr.rel (0) target = $region9
    $region8: #{tpu_custom_call.1} parent=1 // pred_region
      %s19 = ssub.s32 256, 256
      %20 = vsyncadd [#allocation4], %s19
      %s21 = smul.addr %s9, 4
      %s22 = smul.addr %s21, 64
      %s23 = scalar_lea.hbm %s1, %s22
      %s25 = sshll.u32 [#allocation3], 4
      %s26 = int_to_ptr.vmem [resolvable:$true] %s25
      %28 = dma.hbm_to_vmem [thread:$0]  %s23, 256, %s26, [#allocation4]
    $region9: #{tpu_custom_call.1} parent=1 // pred_fallthru
      _
    // Predicated region
    $region10: #{tpu_custom_call.1} parent=1 // pred_check
      _
    $region11: #{tpu_custom_call.1} parent=1 // pred_check_branch
      %30 = sbr.rel (0) target = $region13
    $region12: #{tpu_custom_call.1} parent=1 // pred_region
      %31 = dma.done [#allocation4], 256
    $region13: #{tpu_custom_call.1} parent=1 // pred_fallthru
      _
    %s32 = sld [smem:[#allocation2]]
    %v33 = vld [vmem:[#allocation3] sm:$0xff]
    %v34 = vld [vmem:[#allocation3 + $0x8] sm:$0xff]
    %v35 = vstv %s32
    %v36 = vrcp.pop %v35
    %v37 = vmul.f32 %v33, %v36
    %v38 = vmul.f32 %v34, %v36
    %v39 = vround.ne.pseudo %v37
    %v40 = vround.ne.pseudo %v38
    %41 = vst [vmem:[#allocation6] sm:$0xff] %v37
    %42 = vst [vmem:[#allocation6 + $0x8] sm:$0xff] %v38
    %43 = vst [vmem:[#allocation7] sm:$0xff] %v39
    %44 = vst [vmem:[#allocation7 + $0x8] sm:$0xff] %v40
    %v45 = vmul.f32 %v39, %v35
    %v46 = vmul.f32 %v40, %v35
    %47 = vst [vmem:[#allocation9] sm:$0xff] %v45
    %48 = vst [vmem:[#allocation9 + $0x8] sm:$0xff] %v46
    // Predicated region
    $region14: #{tpu_custom_call.1} parent=1 // pred_check
      _
    $region15: #{tpu_custom_call.1} parent=1 // pred_check_branch
      %50 = sbr.rel (0) target = $region17
    $region16: #{tpu_custom_call.1} parent=1 // pred_region
      %s52 = ssub.s32 256, 256
      %53 = vsyncadd [#allocation5], %s52
      %s54 = smul.addr %s9, 4
      %s55 = smul.addr %s54, 64
      %s56 = scalar_lea.hbm %s2, %s55
      %s58 = sshll.u32 [#allocation6], 4
      %s59 = int_to_ptr.vmem [resolvable:$true] %s58
      %61 = dma.vmem_to_hbm [thread:$0]  %s59, 256, %s56, [#allocation5]
    $region17: #{tpu_custom_call.1} parent=1 // pred_fallthru
      _
    // Predicated region
    $region18: #{tpu_custom_call.1} parent=1 // pred_check
      _
    $region19: #{tpu_custom_call.1} parent=1 // pred_check_branch
      %63 = sbr.rel (0) target = $region21
    $region20: #{tpu_custom_call.1} parent=1 // pred_region
      %s65 = ssub.s32 256, 256
      %66 = vsyncadd [#allocation8], %s65
      %s67 = smul.addr %s9, 4
      %s68 = smul.addr %s67, 64
      %s69 = scalar_lea.hbm %s3, %s68
      %s71 = sshll.u32 [#allocation7], 4
      %s72 = int_to_ptr.vmem [resolvable:$true] %s71
      %74 = dma.vmem_to_hbm [thread:$0]  %s72, 256, %s69, [#allocation8]
    $region21: #{tpu_custom_call.1} parent=1 // pred_fallthru
      _
    // Predicated region
    $region22: #{tpu_custom_call.1} parent=1 // pred_check
      _
    $region23: #{tpu_custom_call.1} parent=1 // pred_check_branch
      %76 = sbr.rel (0) target = $region25
    $region24: #{tpu_custom_call.1} parent=1 // pred_region
      %s78 = ssub.s32 256, 256
      %79 = vsyncadd [#allocation8], %s78
      %s80 = smul.addr %s9, 4
      %s81 = smul.addr %s80, 64
      %s82 = scalar_lea.hbm %s4, %s81
      %s84 = sshll.u32 [#allocation9], 4
      %s85 = int_to_ptr.vmem [resolvable:$true] %s84
      %87 = dma.vmem_to_hbm [thread:$0]  %s85, 256, %s82, [#allocation8]
    $region25: #{tpu_custom_call.1} parent=1 // pred_fallthru
      _
    // Predicated region
    $region26: #{tpu_custom_call.1} parent=1 // pred_check
      _
    $region27: #{tpu_custom_call.1} parent=1 // pred_check_branch
      %89 = sbr.rel (0) target = $region29
    $region28: #{tpu_custom_call.1} parent=1 // pred_region
      %90 = dma.done [#allocation5], 256
    $region29: #{tpu_custom_call.1} parent=1 // pred_fallthru
      _
    // Predicated region
    $region30: #{tpu_custom_call.1} parent=1 // pred_check
      _
    $region31: #{tpu_custom_call.1} parent=1 // pred_check_branch
      %92 = sbr.rel (0) target = $region33
    $region32: #{tpu_custom_call.1} parent=1 // pred_region
      %93 = dma.done [#allocation8], 256
    $region33: #{tpu_custom_call.1} parent=1 // pred_fallthru
      _
    // Predicated region
    $region34: #{tpu_custom_call.1} parent=1 // pred_check
      _
    $region35: #{tpu_custom_call.1} parent=1 // pred_check_branch
      %95 = sbr.rel (0) target = $region37
    $region36: #{tpu_custom_call.1} parent=1 // pred_region
      %96 = dma.done [#allocation8], 256
    $region37: #{tpu_custom_call.1} parent=1 // pred_fallthru
      _
    %97 = vsyncpa [#allocation4], 1
    %98 = vsyncpa [#allocation5], 1
    %99 = vsyncpa [#allocation8], 1

// kernel: tpu_custom_call.1
$region0: #{tpu_custom_call.1}
  #allocation0 [shape = 'u32[]', space=smem, size = 0x4, offset = 0x4, fixed_abs, tag = 'smem constant byte address 0x4 - core index']
  #allocation1 [shape = 'u32[144,128]{1,0:T(1,128)}', space=vmem, size = 0x12000, scoped, tag = 'internal scratch']
  #allocation2 [shape = 'f32[1]{0:T(128)S(6)}', space=smem, size = 0x200, scoped, tag = 'scoped memory for tpu_custom_call.1']
  %s0 = inlined_call_operand.<no memory space> [shape: f32[1], index: 0, kind: input, shape index: {}]
  %s1 = inlined_call_operand.hbm [shape: f32[4,512], index: 1, kind: input, shape index: {}]
  %s2 = inlined_call_operand.hbm [shape: f32[4,512], index: 2, kind: output, shape index: {0}]
  %s3 = inlined_call_operand.hbm [shape: f32[4,512], index: 3, kind: output, shape index: {1}]
  %s4 = inlined_call_operand.hbm [shape: f32[4,512], index: 4, kind: output, shape index: {2}]
  %5 = xla_tuple %s2, %s3, %s4
  %s6 = sld [smem:[#allocation0]]
  $region38: #{tpu_custom_call.1} parent=0
    _
  %s8 = ssub.s32 1, %s6
  %s9 = scalar_select 0, %s8, %s6
  %10 = sst [smem:[#allocation2]] %s0
  $region1: #{tpu_custom_call.1} parent=0
    #allocation3 [shape = 'u8[8192]{0}', space=vmem, size = 0x2000, scoped, tag = 'input window, operand 1, single buffered']
    #allocation4 [shape = 's32[1]{0}', space=sflag, size = 0x4, scoped, tag = 'scoped memory for tpu_custom_call.1']
    #allocation5 [shape = 's32[1]{0}', space=sflag, size = 0x4, scoped, tag = 'scoped memory for tpu_custom_call.1']
    #allocation6 [shape = 'u8[8192]{0}', space=vmem, size = 0x2000, scoped, tag = 'output window, operand 0, single buffered']
    #allocation7 [shape = 'u8[8192]{0}', space=vmem, size = 0x2000, scoped, tag = 'output window, operand 1, single buffered']
    #allocation8 [shape = 's32[1]{0}', space=sflag, size = 0x4, scoped, tag = 'scoped memory for tpu_custom_call.1']
    #allocation9 [shape = 'u8[8192]{0}', space=vmem, size = 0x2000, scoped, tag = 'output window, operand 2, single buffered']
    %11 = vsyncpa [#allocation4], 0
    %12 = vsyncpa [#allocation5], 0
    %13 = vsyncpa [#allocation8], 0
    // Predicated region
    $region2: #{tpu_custom_call.1} parent=1 // pred_check
      _
    $region3: #{tpu_custom_call.1} parent=1 // pred_check_branch
      %15 = sbr.rel (0) target = $region5
    $region4: #{tpu_custom_call.1} parent=1 // pred_region
      _
    $region5: #{tpu_custom_call.1} parent=1 // pred_fallthru
      _
    // Predicated region
    $region6: #{tpu_custom_call.1} parent=1 // pred_check
      _
    $region7: #{tpu_custom_call.1} parent=1 // pred_check_branch
      %17 = sbr.rel (0) target = $region9
    $region8: #{tpu_custom_call.1} parent=1 // pred_region
      %s19 = ssub.s32 256, 256
      %20 = vsyncadd [#allocation4], %s19
      %s22 = sshll.u32 [#allocation3], 4
      %s23 = int_to_ptr.vmem [resolvable:$true] %s22
      %25 = dma.hbm_to_vmem [thread:$0]  %s1, 256, %s23, [#allocation4]
    $region9: #{tpu_custom_call.1} parent=1 // pred_fallthru
      _
    // Predicated region
    $region10: #{tpu_custom_call.1} parent=1 // pred_check
      _
    $region11: #{tpu_custom_call.1} parent=1 // pred_check_branch
      %27 = sbr.rel (0) target = $region13
    $region12: #{tpu_custom_call.1} parent=1 // pred_region
      %28 = dma.done [#allocation4], 256
    $region13: #{tpu_custom_call.1} parent=1 // pred_fallthru
      _
    %s29 = sld [smem:[#allocation2]]
    %v30 = vld [vmem:[#allocation3] sm:$0xff]
    %v31 = vld [vmem:[#allocation3 + $0x8] sm:$0xff]
    %v32 = vstv %s29
    %v33 = vrcp.pop %v32
    %v34 = vmul.f32 %v30, %v33
    %v35 = vmul.f32 %v31, %v33
    %v36 = vround.ne.pseudo %v34
    %v37 = vround.ne.pseudo %v35
    %38 = vst [vmem:[#allocation6] sm:$0xff] %v34
    %39 = vst [vmem:[#allocation6 + $0x8] sm:$0xff] %v35
    %40 = vst [vmem:[#allocation7] sm:$0xff] %v36
    %41 = vst [vmem:[#allocation7 + $0x8] sm:$0xff] %v37
    %v42 = vmul.f32 %v36, %v32
    %v43 = vmul.f32 %v37, %v32
    %44 = vst [vmem:[#allocation9] sm:$0xff] %v42
    %45 = vst [vmem:[#allocation9 + $0x8] sm:$0xff] %v43
    // Predicated region
    $region14: #{tpu_custom_call.1} parent=1 // pred_check
      _
    $region15: #{tpu_custom_call.1} parent=1 // pred_check_branch
      %47 = sbr.rel (0) target = $region17
    $region16: #{tpu_custom_call.1} parent=1 // pred_region
      %s49 = ssub.s32 256, 256
      %50 = vsyncadd [#allocation5], %s49
      %s52 = sshll.u32 [#allocation6], 4
      %s53 = int_to_ptr.vmem [resolvable:$true] %s52
      %55 = dma.vmem_to_hbm [thread:$0]  %s53, 256, %s2, [#allocation5]
    $region17: #{tpu_custom_call.1} parent=1 // pred_fallthru
      _
    // Predicated region
    $region18: #{tpu_custom_call.1} parent=1 // pred_check
      _
    $region19: #{tpu_custom_call.1} parent=1 // pred_check_branch
      %57 = sbr.rel (0) target = $region21
    $region20: #{tpu_custom_call.1} parent=1 // pred_region
      %s59 = ssub.s32 256, 256
      %60 = vsyncadd [#allocation8], %s59
      %s62 = sshll.u32 [#allocation7], 4
      %s63 = int_to_ptr.vmem [resolvable:$true] %s62
      %65 = dma.vmem_to_hbm [thread:$0]  %s63, 256, %s3, [#allocation8]
    $region21: #{tpu_custom_call.1} parent=1 // pred_fallthru
      _
    // Predicated region
    $region22: #{tpu_custom_call.1} parent=1 // pred_check
      _
    $region23: #{tpu_custom_call.1} parent=1 // pred_check_branch
      %67 = sbr.rel (0) target = $region25
    $region24: #{tpu_custom_call.1} parent=1 // pred_region
      %s69 = ssub.s32 256, 256
      %70 = vsyncadd [#allocation8], %s69
      %s72 = sshll.u32 [#allocation9], 4
      %s73 = int_to_ptr.vmem [resolvable:$true] %s72
      %75 = dma.vmem_to_hbm [thread:$0]  %s73, 256, %s4, [#allocation8]
    $region25: #{tpu_custom_call.1} parent=1 // pred_fallthru
      _
    // Predicated region
    $region26: #{tpu_custom_call.1} parent=1 // pred_check
      _
    $region27: #{tpu_custom_call.1} parent=1 // pred_check_branch
      %77 = sbr.rel (0) target = $region29
    $region28: #{tpu_custom_call.1} parent=1 // pred_region
      %78 = dma.done [#allocation5], 256
    $region29: #{tpu_custom_call.1} parent=1 // pred_fallthru
      _
    // Predicated region
    $region30: #{tpu_custom_call.1} parent=1 // pred_check
      _
    $region31: #{tpu_custom_call.1} parent=1 // pred_check_branch
      %80 = sbr.rel (0) target = $region33
    $region32: #{tpu_custom_call.1} parent=1 // pred_region
      %81 = dma.done [#allocation8], 256
    $region33: #{tpu_custom_call.1} parent=1 // pred_fallthru
      _
    // Predicated region
    $region34: #{tpu_custom_call.1} parent=1 // pred_check
      _
    $region35: #{tpu_custom_call.1} parent=1 // pred_check_branch
      %83 = sbr.rel (0) target = $region37
    $region36: #{tpu_custom_call.1} parent=1 // pred_region
      %84 = dma.done [#allocation8], 256
    $region37: #{tpu_custom_call.1} parent=1 // pred_fallthru
      _
    %85 = vsyncpa [#allocation4], 1
    %86 = vsyncpa [#allocation5], 1
    %87 = vsyncpa [#allocation8], 1

</llo_original>
